<compile_context>
chip_gen: v7x
topology: tpu7x:2x2x1
jax: 0.10.0
libtpu: 0.0.40
codegen_flags: <defaults>
</compile_context>

<pallas_src>
import jax
import jax.numpy as jnp
from jax.experimental import pallas as pl
from jax.experimental.pallas import tpu as pltpu


def _round_up(x: int, m: int) -> int:
    return ((x + m - 1) // m) * m


# ~2 MiB per input block: past this a mem-bound elementwise op sees diminishing
# returns, and 2x(in)+2x(out) double-buffered blocks stay well under v7x's
# 64 MiB per-TC VMEM (and trivially under v5e/v6e's 128 MiB).
_TARGET_BLOCK_BYTES = 2 * 1024 * 1024


def _plan_blocks(B: int, C: int, HW: int, itemsize: int,
                 target_bytes: int = _TARGET_BLOCK_BYTES):
    """Pick (tile, n_tiles, fold_batch) for the (B, C, HW) layout."""
    # Largest 128-multiple tile whose per-(batch-slice) block is ~target_bytes.
    tile = (target_bytes // max(1, C * itemsize)) // 128 * 128
    tile = max(128, tile)
    tile = min(tile, _round_up(HW, 128))
    n_tiles = pl.cdiv(HW, tile)

    # Fold the whole batch into one block when it still fits the byte target
    # (fewer grid steps, longer contiguous DMA runs for small images).
    fold_batch = (B > 1) and (B * C * tile * itemsize <= target_bytes)

    # Keep >= 2 grid steps (when HW allows) so v7x megacore has work per TC.
    total_steps = n_tiles if fold_batch else B * n_tiles
    if total_steps < 2 and HW > 128:
        tile = _round_up(pl.cdiv(HW, 2), 128)
        n_tiles = pl.cdiv(HW, tile)

    return tile, n_tiles, fold_batch


def _make_ln_kernel(with_bias: bool, eps: float, inv_c: float):
    """LayerNorm kernel on a (Bblk, C, T) tile; reduction over the C sublanes.

    Single-pass moments: s1 = sum(x), s2 = sum(x*x) over C, then
    mu = s1/C, var = s2/C - mu^2 (clamped at 0 for numerical safety).
    """
    if with_bias:
        def kernel(x_ref, w_ref, b_ref, o_ref):
            x = x_ref[...].astype(jnp.float32)                    # (Bb, C, T)
            s1 = jnp.sum(x, axis=-2, keepdims=True)                # (Bb, 1, T)
            s2 = jnp.sum(x * x, axis=-2, keepdims=True)            # (Bb, 1, T)
            mu = s1 * inv_c
            var = jnp.maximum(s2 * inv_c - mu * mu, 0.0)
            inv = jax.lax.rsqrt(var + eps)                         # EUP slot
            w = w_ref[...]                                         # (C, 1) f32
            b = b_ref[...]                                         # (C, 1) f32
            o_ref[...] = ((x - mu) * inv * w + b).astype(o_ref.dtype)
    else:
        def kernel(x_ref, w_ref, o_ref):
            x = x_ref[...].astype(jnp.float32)                     # (Bb, C, T)
            s1 = jnp.sum(x, axis=-2, keepdims=True)
            s2 = jnp.sum(x * x, axis=-2, keepdims=True)
            mu = s1 * inv_c
            var = jnp.maximum(s2 * inv_c - mu * mu, 0.0)
            inv = jax.lax.rsqrt(var + eps)
            w = w_ref[...]
            # BiasFree: x (NOT mean-subtracted) scaled by rsqrt(var + eps) * w.
            o_ref[...] = (x * inv * w).astype(o_ref.dtype)
    return kernel


def layernorm_nchw(x_nchw, weight, bias=None, *, ln_type="WithBias", eps=1e-5):
    """LaKDNet LayerNorm forward.

    x_nchw: (B, C, H, W);  weight: (C,);  bias: (C,) (ignored for 'BiasFree').
    Returns (B, C, H, W), matching to_4d(body(to_3d(x))) of the PyTorch module.
    """
    B, C, H, W = x_nchw.shape
    HW = H * W
    with_bias = ln_type != "BiasFree"
    itemsize = jnp.dtype(x_nchw.dtype).itemsize

    x3 = x_nchw.reshape(B, C, HW)                      # free contiguous view
    w2 = weight.reshape(C, 1).astype(jnp.float32)      # params stay in f32

    tile, n_tiles, fold_batch = _plan_blocks(B, C, HW, itemsize)
    b_blk = B if fold_batch else 1

    if fold_batch:
        grid = (n_tiles,)
        x_map = lambda t: (0, 0, t)
        p_map = lambda t: (0, 0)
        dims = ("parallel",)
    else:
        grid = (B, n_tiles)
        x_map = lambda b, t: (b, 0, t)
        p_map = lambda b, t: (0, 0)
        dims = ("parallel", "parallel")

    x_spec = pl.BlockSpec((b_blk, C, tile), x_map)
    p_spec = pl.BlockSpec((C, 1), p_map)               # weight / bias (DMA'd once)
    o_spec = pl.BlockSpec((b_blk, C, tile), x_map)

    kernel = _make_ln_kernel(with_bias, float(eps), 1.0 / float(C))

    if with_bias:
        b2 = bias.reshape(C, 1).astype(jnp.float32)
        in_specs = [x_spec, p_spec, p_spec]
        args = (x3, w2, b2)
    else:
        in_specs = [x_spec, p_spec]
        args = (x3, w2)

    # 2x(in) + 2x(out) double-buffered tiles + ~50% headroom for compiler
    # scratch / params; clamp so we never ask for v7x's entire physical VMEM.
    block_bytes = b_blk * C * tile * itemsize
    vmem_limit = min(48 * 1024 * 1024,
                     max(8 * 1024 * 1024, 6 * block_bytes + (1 << 20)))

    y3 = pl.pallas_call(
        kernel,
        out_shape=jax.ShapeDtypeStruct((B, C, HW), x_nchw.dtype),
        grid_spec=pltpu.PrefetchScalarGridSpec(
            num_scalar_prefetch=0,
            grid=grid,
            in_specs=in_specs,
            out_specs=o_spec,
        ),
        compiler_params=pltpu.CompilerParams(
            dimension_semantics=dims,
            vmem_limit_bytes=vmem_limit,
        ),
    )(*args)
    return y3.reshape(B, C, H, W)


def _ref_layernorm_nchw(x, weight, bias, ln_type, eps=1e-5):
    """Pure-JAX reference reproducing the PyTorch module exactly."""
    B, C, H, W = x.shape
    xt = jnp.transpose(x, (0, 2, 3, 1)).reshape(B, H * W, C)   # to_3d
    mu = jnp.mean(xt, axis=-1, keepdims=True)
    var = jnp.mean((xt - mu) ** 2, axis=-1, keepdims=True)     # unbiased=False
    if ln_type == "BiasFree":
        y = xt / jnp.sqrt(var + eps) * weight
    else:
        y = (xt - mu) / jnp.sqrt(var + eps) * weight + bias
    return jnp.transpose(y.reshape(B, H, W, C), (0, 3, 1, 2))  # to_4d


if __name__ == "__main__":
    key = jax.random.PRNGKey(0)
    k_x, k_w, k_b, k_x2 = jax.random.split(key, 4)

    B, C, H, W = 2, 4, 16, 16
    x = jax.random.normal(k_x, (B, C, H, W), dtype=jnp.float32)
    weight = 1.0 + 0.1 * jax.random.normal(k_w, (C,), dtype=jnp.float32)
    bias = 0.1 * jax.random.normal(k_b, (C,), dtype=jnp.float32)

    # WithBias variant (default LayerNorm_type in LaKDNet)
    out_wb = jax.block_until_ready(
        layernorm_nchw(x, weight, bias, ln_type="WithBias"))
    ref_wb = _ref_layernorm_nchw(x, weight, bias, "WithBias")
    assert out_wb.shape == (B, C, H, W), out_wb.shape
    assert jnp.allclose(out_wb, ref_wb, atol=1e-4, rtol=1e-4), "WithBias mismatch"

    # BiasFree variant
    out_bf = jax.block_until_ready(
        layernorm_nchw(x, weight, ln_type="BiasFree"))
    ref_bf = _ref_layernorm_nchw(x, weight, None, "BiasFree")
    assert jnp.allclose(out_bf, ref_bf, atol=1e-4, rtol=1e-4), "BiasFree mismatch"

    # Non-128-divisible spatial extent: exercises the cdiv grid / partial tail
    # block and the megacore split path (B=1).
    x_odd = jax.random.normal(k_x2, (1, C, 12, 13), dtype=jnp.float32)
    out_odd = jax.block_until_ready(
        layernorm_nchw(x_odd, weight, bias, ln_type="WithBias"))
    ref_odd = _ref_layernorm_nchw(x_odd, weight, bias, "WithBias")
    assert jnp.allclose(out_odd, ref_odd, atol=1e-4, rtol=1e-4), "Partial-tile mismatch"

    print("KERNEL_OK")
</pallas_src>

<mosaic_0001>
module attributes {stable_mosaic.version = 11 : i64} {
  func.func @kernel(%arg0: i32, %arg1: memref<2x4x128xf32, #tpu.memory_space<vmem>>, %arg2: memref<4x1xf32, #tpu.memory_space<vmem>>, %arg3: memref<4x1xf32, #tpu.memory_space<vmem>>, %arg4: memref<2x4x128xf32, #tpu.memory_space<vmem>>) attributes {dimension_semantics = [#tpu.dimension_semantics<parallel>], iteration_bounds = array<i64: 2>, scalar_prefetch = 0 : i64, scratch_operands = 0 : i64, tpu.core_type = #tpu.core_type<tc>, window_params = [{transform_indices = @transform_0, window_bounds = array<i64: 2, 4, 128>}, {pipeline_mode = #tpu.pipeline_mode<synchronous>, transform_indices = @transform_1, window_bounds = array<i64: 4, 1>}, {pipeline_mode = #tpu.pipeline_mode<synchronous>, transform_indices = @transform_2, window_bounds = array<i64: 4, 1>}, {transform_indices = @transform_3, window_bounds = array<i64: 2, 4, 128>}]} {
    %c0 = arith.constant 0 : index
    %c0_0 = arith.constant 0 : index
    %c0_1 = arith.constant 0 : index
    %0 = vector.load %arg1[%c0, %c0_0, %c0_1] : memref<2x4x128xf32, #tpu.memory_space<vmem>>, vector<2x4x128xf32>
    %cst = arith.constant dense<0.000000e+00> : vector<2x128xf32>
    %1 = vector.multi_reduction <add>, %0, %cst [1] : vector<2x4x128xf32> to vector<2x128xf32>
    %2 = vector.shape_cast %1 : vector<2x128xf32> to vector<2x1x128xf32>
    %3 = arith.mulf %0, %0 : vector<2x4x128xf32>
    %cst_2 = arith.constant dense<0.000000e+00> : vector<2x128xf32>
    %4 = vector.multi_reduction <add>, %3, %cst_2 [1] : vector<2x4x128xf32> to vector<2x128xf32>
    %5 = vector.shape_cast %4 : vector<2x128xf32> to vector<2x1x128xf32>
    %cst_3 = arith.constant 2.500000e-01 : f32
    %6 = vector.broadcast %cst_3 : f32 to vector<2x1x128xf32>
    %7 = arith.mulf %2, %6 : vector<2x1x128xf32>
    %cst_4 = arith.constant 2.500000e-01 : f32
    %8 = vector.broadcast %cst_4 : f32 to vector<2x1x128xf32>
    %9 = arith.mulf %5, %8 : vector<2x1x128xf32>
    %10 = arith.mulf %7, %7 : vector<2x1x128xf32>
    %11 = arith.subf %9, %10 : vector<2x1x128xf32>
    %cst_5 = arith.constant 0.000000e+00 : f32
    %12 = vector.broadcast %cst_5 : f32 to vector<2x1x128xf32>
    %13 = arith.maximumf %11, %12 : vector<2x1x128xf32>
    %cst_6 = arith.constant 9.99999974E-6 : f32
    %14 = vector.broadcast %cst_6 : f32 to vector<2x1x128xf32>
    %15 = arith.addf %13, %14 : vector<2x1x128xf32>
    %16 = math.rsqrt %15 : vector<2x1x128xf32>
    %c0_7 = arith.constant 0 : index
    %c0_8 = arith.constant 0 : index
    %17 = vector.load %arg2[%c0_7, %c0_8] : memref<4x1xf32, #tpu.memory_space<vmem>>, vector<4x1xf32>
    %c0_9 = arith.constant 0 : index
    %c0_10 = arith.constant 0 : index
    %18 = vector.load %arg3[%c0_9, %c0_10] : memref<4x1xf32, #tpu.memory_space<vmem>>, vector<4x1xf32>
    %19 = vector.broadcast %7 : vector<2x1x128xf32> to vector<2x4x128xf32>
    %20 = arith.subf %0, %19 : vector<2x4x128xf32>
    %21 = vector.broadcast %16 : vector<2x1x128xf32> to vector<2x4x128xf32>
    %22 = arith.mulf %20, %21 : vector<2x4x128xf32>
    %23 = vector.shape_cast %17 : vector<4x1xf32> to vector<1x4x1xf32>
    %24 = vector.broadcast %23 : vector<1x4x1xf32> to vector<2x4x128xf32>
    %25 = arith.mulf %22, %24 : vector<2x4x128xf32>
    %26 = vector.shape_cast %18 : vector<4x1xf32> to vector<1x4x1xf32>
    %27 = vector.broadcast %26 : vector<1x4x1xf32> to vector<2x4x128xf32>
    %28 = arith.addf %25, %27 : vector<2x4x128xf32>
    %c0_11 = arith.constant 0 : index
    %c0_12 = arith.constant 0 : index
    %c0_13 = arith.constant 0 : index
    %29 = vector.load %arg4[%c0_11, %c0_12, %c0_13] : memref<2x4x128xf32, #tpu.memory_space<vmem>>, vector<2x4x128xf32>
    tpu.vector_store %arg4[%c0_11, %c0_12, %c0_13], %28 {strides = array<i32>} : memref<2x4x128xf32, #tpu.memory_space<vmem>>, vector<2x4x128xf32>,
    return
  }
  func.func @transform_0(%arg0: i32) -> (i32, i32, i32) {
    %c0_i32 = arith.constant 0 : i32
    %c0_i32_0 = arith.constant 0 : i32
    %c0_i32_1 = arith.constant 0 : i32
    return %c0_i32, %c0_i32_0, %arg0 : i32, i32, i32
  }
  func.func @transform_1(%arg0: i32) -> (i32, i32) {
    %c0_i32 = arith.constant 0 : i32
    %c0_i32_0 = arith.constant 0 : i32
    %c0_i32_1 = arith.constant 0 : i32
    return %c0_i32, %c0_i32_0 : i32, i32
  }
  func.func @transform_2(%arg0: i32) -> (i32, i32) {
    %c0_i32 = arith.constant 0 : i32
    %c0_i32_0 = arith.constant 0 : i32
    %c0_i32_1 = arith.constant 0 : i32
    return %c0_i32, %c0_i32_0 : i32, i32
  }
  func.func @transform_3(%arg0: i32) -> (i32, i32, i32) {
    %c0_i32 = arith.constant 0 : i32
    %c0_i32_0 = arith.constant 0 : i32
    %c0_i32_1 = arith.constant 0 : i32
    return %c0_i32, %c0_i32_0, %arg0 : i32, i32, i32
  }
}

</mosaic_0001>

<llo_original>
// kernel: tpu_custom_call.1
$region0: #{tpu_custom_call.1}
  #allocation0 [shape = 'u32[]', space=smem, size = 0x4, offset = 0x4, fixed_abs, tag = 'smem constant byte address 0x4 - core index']
  #allocation1 [shape = 'u32[144,128]{1,0:T(1,128)}', space=vmem, size = 0x12000, scoped, tag = 'internal scratch']
  %s0 = inlined_call_operand.hbm [shape: f32[2,4,256], index: 0, kind: input, shape index: {}]
  %s1 = inlined_call_operand.vmem [shape: f32[4,1], index: 1, kind: input, shape index: {}]
  %s2 = inlined_call_operand.vmem [shape: f32[4,1], index: 2, kind: input, shape index: {}]
  %s3 = inlined_call_operand.hbm [shape: f32[2,4,256], index: 3, kind: output, shape index: {}]
  %s4 = sld [smem:[#allocation0]]
  $region49: #{tpu_custom_call.1} parent=0
    _
  %s6 = ssub.s32 1, %s4
  %s7 = scalar_select 0, %s6, %s4
  $region1: #{tpu_custom_call.1} parent=0
    #allocation2 [shape = 'u8[8192]{0}', space=vmem, size = 0x2000, scoped, tag = 'input window, operand 0']
    #allocation3 [shape = 's32[2]{0}', space=sflag, size = 0x8, scoped, tag = 'scoped memory for tpu_custom_call.1']
    #allocation4 [shape = 's32[2]{0}', space=sflag, size = 0x8, scoped, tag = 'scoped memory for tpu_custom_call.1']
    #allocation5 [shape = 'u8[8192]{0}', space=vmem, size = 0x2000, scoped, tag = 'output window, operand 0']
    %8 = vsyncpa [#allocation3], 0
    %s9 = scalar_lea.sflag [#allocation3], 1
    %10 = vsyncpa %s9, 0
    %11 = vsyncpa [#allocation4], 0
    %s12 = scalar_lea.sflag [#allocation4], 1
    %13 = vsyncpa %s12, 0
    loop: start=0, step=1, limit=4
    $region2: #{tpu_custom_call.1} parent=1 // loop_pre_header
      _
    $region3: #{tpu_custom_call.1} parent=1 // loop_header
      %s15 = sphi 0, %s19
      %p16 = scmp.ge.s32.totalorder %s15, 4
      %s25 = sphi 0, %s27
      %s28 = sphi 0, %s25
      %s29 = sphi 0, %s28
      %s45 = sphi 0, %s29
      %s49 = sphi 0, %s49
      %s51 = sphi 0, %s49
      %s52 = sphi 0, %s51
      %s66 = sphi 0, %s52
      %s70 = sphi 0, %s70
      %s72 = sphi 0, %s70
      %s73 = sphi 0, %s72
      %s87 = sphi 0, %s73
      %s93 = sphi 0, %s95
      %s96 = sphi 0, %s93
      %s97 = sphi 0, %s96
      %s113 = sphi 0, %s97
    $region4: #{tpu_custom_call.1} parent=1 // loop_header_branch
      %18 = sbr.rel (%p16) target = $region8
    $region5: #{tpu_custom_call.1} parent=1 // loop_body
      %s20 = ssub.s32 %s15, 1
      %s21 = ssub.s32 %s15, 2
      %s22 = sadd.s32 %s15, 1
      %s23 = ssub.s32 %s15, %s22
      %p24 = scmp.eq.s32.totalorder %s23, 0
      %s26 = sadd.s32 %s25, 1
      %s27 = scalar_select %p24, %s25, %s26
      %p30 = pneg %p24
      %p31 = scmp.eq.s32.totalorder %s15, 1
      %p32 = por %p30, %p31
      %p33 = scmp.ne.s32.totalorder %s25, %s28
      %p34 = scmp.eq.s32.totalorder %s15, 0
      %p35 = por %p33, %p34
      %p36 = scmp.ne.s32.totalorder %s25, %s28
      %p37 = scmp.eq.s32.totalorder %s20, 1
      %p38 = por %p36, %p37
      %p39 = scmp.ne.s32.totalorder %s28, %s29
      %p40 = scmp.eq.s32.totalorder %s20, 0
      %p41 = por %p39, %p40
      %p42 = scmp.ne.s32.totalorder %s28, %s29
      %p43 = scmp.eq.s32.totalorder %s21, 1
      %p44 = por %p42, %p43
      %p46 = scmp.ne.s32.totalorder %s29, %s45
      %p47 = scmp.eq.s32.totalorder %s21, 0
      %p48 = por %p46, %p47
      %s50 = sadd.s32 %s49, 1
      %p53 = scmp.eq.s32.totalorder %s15, 1
      %p54 = scmp.ne.s32.totalorder %s49, %s51
      %p55 = scmp.eq.s32.totalorder %s15, 0
      %p56 = por %p54, %p55
      %p57 = scmp.ne.s32.totalorder %s49, %s51
      %p58 = scmp.eq.s32.totalorder %s20, 1
      %p59 = por %p57, %p58
      %p60 = scmp.ne.s32.totalorder %s51, %s52
      %p61 = scmp.eq.s32.totalorder %s20, 0
      %p62 = por %p60, %p61
      %p63 = scmp.ne.s32.totalorder %s51, %s52
      %p64 = scmp.eq.s32.totalorder %s21, 1
      %p65 = por %p63, %p64
      %p67 = scmp.ne.s32.totalorder %s52, %s66
      %p68 = scmp.eq.s32.totalorder %s21, 0
      %p69 = por %p67, %p68
      %s71 = sadd.s32 %s70, 1
      %p74 = scmp.eq.s32.totalorder %s15, 1
      %p75 = scmp.ne.s32.totalorder %s70, %s72
      %p76 = scmp.eq.s32.totalorder %s15, 0
      %p77 = por %p75, %p76
      %p78 = scmp.ne.s32.totalorder %s70, %s72
      %p79 = scmp.eq.s32.totalorder %s20, 1
      %p80 = por %p78, %p79
      %p81 = scmp.ne.s32.totalorder %s72, %s73
      %p82 = scmp.eq.s32.totalorder %s20, 0
      %p83 = por %p81, %p82
      %p84 = scmp.ne.s32.totalorder %s72, %s73
      %p85 = scmp.eq.s32.totalorder %s21, 1
      %p86 = por %p84, %p85
      %p88 = scmp.ne.s32.totalorder %s73, %s87
      %p89 = scmp.eq.s32.totalorder %s21, 0
      %p90 = por %p88, %p89
      %s91 = ssub.s32 %s15, %s22
      %p92 = scmp.eq.s32.totalorder %s91, 0
      %s94 = sadd.s32 %s93, 1
      %s95 = scalar_select %p92, %s93, %s94
      %p98 = pneg %p92
      %p99 = scmp.eq.s32.totalorder %s15, 1
      %p100 = por %p98, %p99
      %p101 = scmp.ne.s32.totalorder %s93, %s96
      %p102 = scmp.eq.s32.totalorder %s15, 0
      %p103 = por %p101, %p102
      %p104 = scmp.ne.s32.totalorder %s93, %s96
      %p105 = scmp.eq.s32.totalorder %s20, 1
      %p106 = por %p104, %p105
      %p107 = scmp.ne.s32.totalorder %s96, %s97
      %p108 = scmp.eq.s32.totalorder %s20, 0
      %p109 = por %p107, %p108
      %p110 = scmp.ne.s32.totalorder %s96, %s97
      %p111 = scmp.eq.s32.totalorder %s21, 1
      %p112 = por %p110, %p111
      %p114 = scmp.ne.s32.totalorder %s97, %s113
      %p115 = scmp.eq.s32.totalorder %s21, 0
      %p116 = por %p114, %p115
      %p117 = scmp.le.s32.totalorder 1, %s15
      %p118 = scmp.lt.s32.totalorder %s15, 3
      %p119 = pnand %p117, %p118
      %p120 = pneg %p119
      // Predicated region
      $region9: #{tpu_custom_call.1} parent=5 // pred_check
        _
      $region10: #{tpu_custom_call.1} parent=5 // pred_check_branch
        %122 = sbr.rel (%p119) target = $region12
      $region11: #{tpu_custom_call.1} parent=5 // pred_region
        %s123 = ssub.s32 %s15, 1
        // Predicated region
        $region13: #{tpu_custom_call.1} parent=11 // pred_check
          %p124 = pneg %p62
        $region14: #{tpu_custom_call.1} parent=11 // pred_check_branch
          %126 = sbr.rel (%p124) target = $region16
        $region15: #{tpu_custom_call.1} parent=11 // pred_region
          _
        $region16: #{tpu_custom_call.1} parent=11 // pred_fallthru
          _
        // Predicated region
        $region17: #{tpu_custom_call.1} parent=11 // pred_check
          %p127 = pneg %p83
        $region18: #{tpu_custom_call.1} parent=11 // pred_check_branch
          %129 = sbr.rel (%p127) target = $region20
        $region19: #{tpu_custom_call.1} parent=11 // pred_region
          _
        $region20: #{tpu_custom_call.1} parent=11 // pred_fallthru
          _
      $region12: #{tpu_custom_call.1} parent=5 // pred_fallthru
        _
      %p130 = scmp.lt.s32.totalorder %s15, 2
      // Predicated region
      $region21: #{tpu_custom_call.1} parent=5 // pred_check
        %p131 = pneg %p130
      $region22: #{tpu_custom_call.1} parent=5 // pred_check_branch
        %133 = sbr.rel (%p131) target = $region24
      $region23: #{tpu_custom_call.1} parent=5 // pred_region
        // Predicated region
        $region25: #{tpu_custom_call.1} parent=23 // pred_check
          %p134 = pneg %p35
        $region26: #{tpu_custom_call.1} parent=23 // pred_check_branch
          %136 = sbr.rel (%p134) target = $region28
        $region27: #{tpu_custom_call.1} parent=23 // pred_region
          %s137 = sand.u32 %s25, 1
          %s138 = scalar_lea.sflag [#allocation3], %s137
          %s139 = sand.u32 %s25, 1
          %s140 = smul.addr %s139, 8
          %s141 = scalar_lea.vmem [#allocation2], %s140
          %s143 = ssub.s32 128, 128
          %144 = vsyncadd %s138, %s143
          %s145 = smul.addr %s15, 64
          %s146 = scalar_lea.hbm %s0, %s145
          %s147 = sshll.u32 %s141, 4
          %s148 = int_to_ptr.vmem [resolvable:$true] %s147
          %153 = dma.hbm_to_vmem [thread:$0]  %s146, 128, %s148, %s138, 128, 64, 4
        $region28: #{tpu_custom_call.1} parent=23 // pred_fallthru
          _
      $region24: #{tpu_custom_call.1} parent=5 // pred_fallthru
        _
      %p154 = scmp.le.s32.totalorder 1, %s15
      %p155 = scmp.lt.s32.totalorder %s15, 3
      %p156 = pnand %p154, %p155
      %p157 = pneg %p156
      // Predicated region
      $region29: #{tpu_custom_call.1} parent=5 // pred_check
        _
      $region30: #{tpu_custom_call.1} parent=5 // pred_check_branch
        %159 = sbr.rel (%p156) target = $region32
      $region31: #{tpu_custom_call.1} parent=5 // pred_region
        %s160 = ssub.s32 %s15, 1
        %s161 = sand.u32 %s28, 1
        %s162 = scalar_lea.sflag [#allocation3], %s161
        %s163 = sand.u32 %s28, 1
        %s164 = smul.addr %s163, 8
        %s165 = scalar_lea.vmem [#allocation2], %s164
        // Predicated region
        $region33: #{tpu_custom_call.1} parent=31 // pred_check
          %p166 = pneg %p41
        $region34: #{tpu_custom_call.1} parent=31 // pred_check_branch
          %168 = sbr.rel (%p166) target = $region36
        $region35: #{tpu_custom_call.1} parent=31 // pred_region
          %169 = dma.done %s162, 128
        $region36: #{tpu_custom_call.1} parent=31 // pred_fallthru
          _
        %s170 = sand.u32 %s28, 1
        %s171 = scalar_lea.sflag [#allocation3], %s170
        %s172 = sand.u32 %s28, 1
        %s173 = smul.addr %s172, 8
        %s174 = scalar_lea.vmem [#allocation2], %s173
        %p175 = pneg %p41
        %p176 = pneg %p38
        %p177 = pneg %p62
        %p178 = pneg %p59
        %p179 = pneg %p83
        %p180 = pneg %p80
        %p181 = pneg %p109
        %p182 = pneg %p106
        %s183 = sand.u32 %s96, 1
        %s184 = scalar_lea.sflag [#allocation4], %s183
        %s185 = sand.u32 %s96, 1
        %s186 = smul.addr %s185, 8
        %s187 = scalar_lea.vmem [#allocation5], %s186
        %v188 = vld [vmem:[%s165] sm:$0xf]
        %v189 = vld [vmem:[%s165 + $0x4] sm:$0xf]
        %vm190 = vcmask 1043456
        %v191 = vsel %vm190, %v188, 0.0
        %v192 = vrot.slane %v191, 4
        %v193 = vadd.f32 %v191, %v192
        %v194 = vrot.slane %v193, 2
        %v195 = vadd.f32 %v193, %v194
        %v196 = vrot.slane %v195, 1
        %v197 = vadd.f32 %v195, %v196
        %v198 = vsel %vm190, %v189, 0.0
        %v199 = vrot.slane %v198, 4
        %v200 = vadd.f32 %v198, %v199
        %v201 = vrot.slane %v200, 2
        %v202 = vadd.f32 %v200, %v201
        %v203 = vrot.slane %v202, 1
        %v204 = vadd.f32 %v202, %v203
        %v205 = vmul.f32 %v188, %v188
        %v206 = vmul.f32 %v189, %v189
        %v207 = vsel %vm190, %v205, 0.0
        %v208 = vrot.slane %v207, 4
        %v209 = vadd.f32 %v207, %v208
        %v210 = vrot.slane %v209, 2
        %v211 = vadd.f32 %v209, %v210
        %v212 = vrot.slane %v211, 1
        %v213 = vadd.f32 %v211, %v212
        %v214 = vsel %vm190, %v206, 0.0
        %v215 = vrot.slane %v214, 4
        %v216 = vadd.f32 %v214, %v215
        %v217 = vrot.slane %v216, 2
        %v218 = vadd.f32 %v216, %v217
        %v219 = vrot.slane %v218, 1
        %v220 = vadd.f32 %v218, %v219
        %v221 = vmul.f32 %v197, 0.25
        %v222 = vmul.f32 %v204, 0.25
        %v223 = vmul.f32 %v213, 0.25
        %v224 = vmul.f32 %v220, 0.25
        %v225 = vmul.f32 %v221, %v221
        %v226 = vmul.f32 %v222, %v222
        %v227 = vsub.f32 %v223, %v225
        %v228 = vsub.f32 %v224, %v226
        %v229 = vmax.f32 %v227, 0.0
        %v230 = vmax.f32 %v228, 0.0
        %v231 = vadd.f32 %v229, 1e-05
        %v232 = vadd.f32 %v230, 1e-05
        %v233 = vrsqrt.pop %v231
        %v234 = vrsqrt.pop %v232
        %v235 = vld [vmem:[%s1] sm:$0xf]
        %v236 = vld [vmem:[%s2] sm:$0xf]
        %v237 = vsub.f32 %v188, %v221
        %v238 = vsub.f32 %v189, %v222
        %v239 = vmul.f32 %v237, %v233
        %v240 = vmul.f32 %v238, %v234
        %242 = vset.pattern.permute.xlu0 0
        %243 = vperm.xlu0 %242, %v235
        %v244 = vpop.permute.xlu0 %243
        %v246 = vmul.f32 %v239, %v244
        %v247 = vmul.f32 %v240, %v244
        %249 = vset.pattern.permute.xlu0 0
        %250 = vperm.xlu0 %249, %v236
        %v251 = vpop.permute.xlu0 %250
        %v253 = vadd.f32 %v246, %v251
        %v254 = vadd.f32 %v247, %v251
        %255 = vst [vmem:[%s187] sm:$0xf] %v253
        %256 = vst [vmem:[%s187 + $0x4] sm:$0xf] %v254
        %s257 = sand.u32 %s96, 1
        %s258 = scalar_lea.sflag [#allocation4], %s257
        %s259 = sand.u32 %s96, 1
        %s260 = smul.addr %s259, 8
        %s261 = scalar_lea.vmem [#allocation5], %s260
        // Predicated region
        $region37: #{tpu_custom_call.1} parent=31 // pred_check
          %p262 = pneg %p106
        $region38: #{tpu_custom_call.1} parent=31 // pred_check_branch
          %264 = sbr.rel (%p262) target = $region40
        $region39: #{tpu_custom_call.1} parent=31 // pred_region
          %s266 = ssub.s32 128, 128
          %267 = vsyncadd %s258, %s266
          %s268 = smul.addr %s20, 64
          %s269 = scalar_lea.hbm %s3, %s268
          %s270 = sshll.u32 %s261, 4
          %s271 = int_to_ptr.vmem [resolvable:$true] %s270
          %276 = dma.vmem_to_hbm [thread:$0]  %s271, 128, %s269, %s258, 64, 128, 4
        $region40: #{tpu_custom_call.1} parent=31 // pred_fallthru
          _
      $region32: #{tpu_custom_call.1} parent=5 // pred_fallthru
        _
      %p277 = scmp.le.s32.totalorder 2, %s15
      // Predicated region
      $region41: #{tpu_custom_call.1} parent=5 // pred_check
        %p278 = pneg %p277
      $region42: #{tpu_custom_call.1} parent=5 // pred_check_branch
        %280 = sbr.rel (%p278) target = $region44
      $region43: #{tpu_custom_call.1} parent=5 // pred_region
        %s281 = ssub.s32 %s15, 2
        // Predicated region
        $region45: #{tpu_custom_call.1} parent=43 // pred_check
          %p282 = pneg %p112
        $region46: #{tpu_custom_call.1} parent=43 // pred_check_branch
          %284 = sbr.rel (%p282) target = $region48
        $region47: #{tpu_custom_call.1} parent=43 // pred_region
          %s285 = sand.u32 %s97, 1
          %s286 = scalar_lea.sflag [#allocation4], %s285
          %s287 = sand.u32 %s97, 1
          %s288 = smul.addr %s287, 8
          %s289 = scalar_lea.vmem [#allocation5], %s288
          %290 = dma.done %s286, 128
        $region48: #{tpu_custom_call.1} parent=43 // pred_fallthru
          _
      $region44: #{tpu_custom_call.1} parent=5 // pred_fallthru
        _
    $region6: #{tpu_custom_call.1} parent=1 // loop_footer
      %s19 = sadd.s32 1, %s15
    $region7: #{tpu_custom_call.1} parent=1 // loop_footer_branch
      %14 = sbr.rel target = $region3
    $region8: #{tpu_custom_call.1} parent=1 // loop_exit
      _
    %291 = vsyncpa [#allocation3], 1
    %s292 = scalar_lea.sflag [#allocation3], 1
    %293 = vsyncpa %s292, 1
    %294 = vsyncpa [#allocation4], 1
    %s295 = scalar_lea.sflag [#allocation4], 1
    %296 = vsyncpa %s295, 1

</llo_original>
